<compile_context>
chip_gen: v6e
topology: v6e:2x2x1
jax: 0.10.0
libtpu: 0.0.40
codegen_flags: <defaults>
</compile_context>

<pallas_src>
import jax
import jax.numpy as jnp
from jax.experimental import pallas as pl
from jax.experimental.pallas import tpu as pltpu


def _make_fused_kernel(H, W, cinp, pad, b_blk, co1, co2):
    """Fused 3x3 main conv + both folded 1x1 heads for a block of b_blk images."""
    HW = H * W

    def kernel(x_ref, wf_ref, o1_ref, o2_ref, xpad_ref):
        # x_ref   : (b_blk, CinP, HW)       flattened, channel-padded NCHW images
        # wf_ref  : (Co1+Co2, 9*CinP + 1)   folded weights; last column = folded bias
        # o1_ref  : (b_blk, Co1, HW),  o2_ref : (b_blk, Co2, HW)
        # xpad_ref: (CinP, HW + 2*pad)      VMEM staging buffer with zero flanks

        # Zero only the two pad flanks; the centre [pad:pad+HW] is fully overwritten
        # for every image below.  (Unconditional: scratch is per-core under megacore.)
        zflank = jnp.zeros((cinp, pad), jnp.float32)
        xpad_ref[:, 0:pad] = zflank
        xpad_ref[:, pad + HW:pad + HW + pad] = zflank

        # Loop-invariant values, hoisted out of the per-image loop.
        col = jax.lax.broadcasted_iota(jnp.int32, (cinp, HW), 1) % W
        not_left = col > 0               # kx==0 taps must not read previous row's last col
        not_right = col < W - 1          # kx==2 taps must not read next row's first col
        ones_row = jnp.ones((1, HW), jnp.float32)   # multiplies the folded-bias column
        wf = wf_ref[...]

        for b in range(b_blk):           # static unroll over the per-step batch block
            # Stage image b into the zero-padded lane buffer (lane-aligned: pad % 128 == 0).
            xpad_ref[:, pad:pad + HW] = x_ref[b]
            xp = xpad_ref[...]           # (CinP, HW + 2*pad)

            # im2col: 9 shifted copies -> (9*CinP, HW).  pad >= W+1 covers top/bottom row
            # over/underflow via the zero flanks; the column masks handle left/right edges.
            taps = []
            for ky in range(3):
                for kx in range(3):
                    s = (ky - 1) * W + (kx - 1)          # flattened tap offset
                    t = xp[:, pad + s:pad + s + HW]      # (CinP, HW) static lane slice
                    if kx == 0:
                        t = jnp.where(not_left, t, 0.0)
                    elif kx == 2:
                        t = jnp.where(not_right, t, 0.0)
                    taps.append(t)
            patches = jnp.concatenate(taps + [ones_row], axis=0)   # (9*CinP + 1, HW)

            # Single MXU matmul: main conv + both heads + all biases, folded together.
            res = jnp.dot(wf, patches, preferred_element_type=jnp.float32)  # (Co1+Co2, HW)

            o1_ref[b] = res[0:co1].astype(o1_ref.dtype)
            o2_ref[b] = res[co1:co1 + co2].astype(o2_ref.dtype)

    return kernel


@jax.jit
def multi_branch_forward(x_nchw, params):
    """Forward pass of MultiBranchModule.  Returns a list (one NCHW array per sub-branch)."""
    wm, bm, w1, b1, w2, b2 = params                  # PyTorch layouts: OIHW / (Co, Ci) / (Co,)
    N, Cin, H, W = x_nchw.shape
    Cmid = wm.shape[0]
    Co1, Co2 = w1.shape[0], w2.shape[0]
    CO = Co1 + Co2
    HW = H * W

    PAD = 128                                        # staging offset: lane-aligned AND >= W+1
    assert PAD % 128 == 0 and PAD >= W + 1
    assert HW % 128 == 0

    CinP = ((Cin + 7) // 8) * 8                      # pad channels to a full sublane tile

    # Batch blocking: amortize per-grid-step overhead for large N, while keeping at least
    # two "parallel" steps (both v7x TensorCores busy) whenever N >= 2.
    B_TARGET = 8
    steps = max(min(N, 2), pl.cdiv(N, B_TARGET))
    B_blk = pl.cdiv(N, steps)
    N_pad = steps * B_blk

    f32 = jnp.float32
    hi = jax.lax.Precision.HIGHEST

    # Input: flattened NCHW (free reshape), zero-padded to CinP channels / N_pad images.
    x_flat = x_nchw.reshape(N, Cin, HW)
    x_flat = jnp.pad(x_flat, ((0, N_pad - N), (0, CinP - Cin), (0, 0))).astype(f32)

    # Fold main conv + both linear heads + all biases into ONE (CO, 9*CinP + 1) weight:
    #   y  = Wm @ P + bm            (P = im2col patch matrix)
    #   oK = Wk @ y + bk = (Wk @ Wm) @ P + (Wk @ bm + bk)
    wm_p = jnp.pad(wm, ((0, 0), (0, CinP - Cin), (0, 0), (0, 0)))            # (Cmid, CinP, 3, 3)
    wm2d = jnp.transpose(wm_p, (0, 2, 3, 1)).reshape(Cmid, 9 * CinP)         # cols = (ky, kx, ci)
    wheads = jnp.concatenate([w1, w2], axis=0)                               # (CO, Cmid)
    bheads = jnp.concatenate([b1, b2], axis=0)                               # (CO,)
    w_fused = jnp.dot(wheads, wm2d, precision=hi)                            # (CO, 9*CinP)
    b_fused = jnp.dot(wheads, bm, precision=hi) + bheads                     # (CO,)
    wf = jnp.concatenate([w_fused, b_fused[:, None]], axis=1).astype(f32)    # (CO, 9*CinP + 1)

    kernel = _make_fused_kernel(H, W, CinP, PAD, B_blk, Co1, Co2)

    o1, o2 = pl.pallas_call(
        kernel,
        out_shape=(jax.ShapeDtypeStruct((N_pad, Co1, HW), f32),
                   jax.ShapeDtypeStruct((N_pad, Co2, HW), f32)),
        grid=(steps,),
        in_specs=[
            pl.BlockSpec((B_blk, CinP, HW), lambda g: (g, 0, 0)),
            pl.BlockSpec((CO, 9 * CinP + 1), lambda g: (0, 0)),
        ],
        out_specs=(
            pl.BlockSpec((B_blk, Co1, HW), lambda g: (g, 0, 0)),
            pl.BlockSpec((B_blk, Co2, HW), lambda g: (g, 0, 0)),
        ),
        scratch_shapes=[pltpu.VMEM((CinP, HW + 2 * PAD), f32)],
        compiler_params=pltpu.CompilerParams(dimension_semantics=("parallel",)),
    )(x_flat, wf)

    # (N, C, H*W) is already flattened NCHW -> free reshapes; drop any batch padding.
    return [o1[:N].reshape(N, Co1, H, W), o2[:N].reshape(N, Co2, H, W)]


def init_params(key, cin=4, cmid=8, co1=8, co2=16):
    """Deterministic synthetic parameters in PyTorch layouts (OIHW / (Co, Ci))."""
    k = jax.random.split(key, 6)
    wm = jax.random.normal(k[0], (cmid, cin, 3, 3), jnp.float32) * 0.1   # OIHW, like nn.Conv2d
    bm = jax.random.normal(k[1], (cmid,), jnp.float32) * 0.1
    w1 = jax.random.normal(k[2], (co1, cmid), jnp.float32) * 0.1         # 1x1 conv weight (Co, Ci)
    b1 = jax.random.normal(k[3], (co1,), jnp.float32) * 0.1
    w2 = jax.random.normal(k[4], (co2, cmid), jnp.float32) * 0.1
    b2 = jax.random.normal(k[5], (co2,), jnp.float32) * 0.1
    return (wm, bm, w1, b1, w2, b2)


def reference(x_nchw, params):
    """Pure-JAX reference of the same Conv2d stack (PyTorch semantics)."""
    wm, bm, w1, b1, w2, b2 = params
    hi = jax.lax.Precision.HIGHEST
    y = jax.lax.conv_general_dilated(
        x_nchw, wm, window_strides=(1, 1), padding=((1, 1), (1, 1)),
        dimension_numbers=("NCHW", "OIHW", "NCHW"), precision=hi)
    y = y + bm[None, :, None, None]
    o1 = jnp.einsum("oc,nchw->nohw", w1, y, precision=hi) + b1[None, :, None, None]
    o2 = jnp.einsum("oc,nchw->nohw", w2, y, precision=hi) + b2[None, :, None, None]
    return [o1, o2]


if __name__ == "__main__":
    key = jax.random.PRNGKey(0)
    kx, kp = jax.random.split(key)
    x = jax.random.normal(kx, (2, 4, 16, 16), jnp.float32)   # NCHW, like PyTorch
    params = init_params(kp)

    outs = multi_branch_forward(x, params)
    outs = [jax.block_until_ready(o) for o in outs]

    assert outs[0].shape == (2, 8, 16, 16)
    assert outs[1].shape == (2, 16, 16, 16)

    # numerical check against the pure-JAX reference
    refs = reference(x, params)
    for o, r in zip(outs, refs):
        err = float(jnp.max(jnp.abs(o - r)))
        assert jnp.allclose(o, r, atol=1e-2, rtol=1e-2), f"max abs err {err}"

    print("KERNEL_OK")
</pallas_src>

<mosaic_0001>
module attributes {stable_mosaic.version = 11 : i64} {
  func.func @kernel(%arg0: i32, %arg1: memref<1x8x256xf32, #tpu.memory_space<vmem>>, %arg2: memref<24x73xf32, #tpu.memory_space<vmem>>, %arg3: memref<1x8x256xf32, #tpu.memory_space<vmem>>, %arg4: memref<1x16x256xf32, #tpu.memory_space<vmem>>, %arg5: memref<8x512xf32, #tpu.memory_space<vmem>>) attributes {dimension_semantics = [#tpu.dimension_semantics<parallel>], iteration_bounds = array<i64: 2>, scalar_prefetch = 0 : i64, scratch_operands = 1 : i64, tpu.core_type = #tpu.core_type<tc>, window_params = [{transform_indices = @transform_0, window_bounds = array<i64: 1, 8, 256>}, {pipeline_mode = #tpu.pipeline_mode<synchronous>, transform_indices = @transform_1, window_bounds = array<i64: 24, 73>}, {transform_indices = @transform_2, window_bounds = array<i64: 1, 8, 256>}, {transform_indices = @transform_3, window_bounds = array<i64: 1, 16, 256>}]} {
    %cst = arith.constant 0.000000e+00 : f32
    %0 = vector.broadcast %cst : f32 to vector<8x128xf32>
    %c0 = arith.constant 0 : index
    %c0_0 = arith.constant 0 : index
    %1 = vector.load %arg5[%c0, %c0_0] : memref<8x512xf32, #tpu.memory_space<vmem>>, vector<8x128xf32>
    tpu.vector_store %arg5[%c0, %c0_0], %0 {strides = array<i32>} : memref<8x512xf32, #tpu.memory_space<vmem>>, vector<8x128xf32>,
    %c0_1 = arith.constant 0 : index
    %c384 = arith.constant 384 : index
    %2 = vector.load %arg5[%c0_1, %c384] : memref<8x512xf32, #tpu.memory_space<vmem>>, vector<8x128xf32>
    tpu.vector_store %arg5[%c0_1, %c384], %0 {strides = array<i32>} : memref<8x512xf32, #tpu.memory_space<vmem>>, vector<8x128xf32>,
    %3 = tpu.iota {dimensions = array<i32: 1>} : vector<8x256xi32>
    %c16_i32 = arith.constant 16 : i32
    %c0_i32 = arith.constant 0 : i32
    %4 = arith.cmpi eq, %c16_i32, %c0_i32 : i32
    %c1_i32 = arith.constant 1 : i32
    %5 = arith.select %4, %c1_i32, %c16_i32 : i32
    %6 = vector.broadcast %5 : i32 to vector<8x256xi32>
    %7 = arith.remsi %3, %6 : vector<8x256xi32>
    %c0_i32_2 = arith.constant 0 : i32
    %8 = vector.broadcast %c0_i32_2 : i32 to vector<8x256xi32>
    %9 = arith.cmpi ne, %7, %8 : vector<8x256xi32>
    %c0_i32_3 = arith.constant 0 : i32
    %10 = vector.broadcast %c0_i32_3 : i32 to vector<8x256xi32>
    %11 = arith.cmpi slt, %7, %10 : vector<8x256xi32>
    %c0_i32_4 = arith.constant 0 : i32
    %12 = arith.cmpi slt, %5, %c0_i32_4 : i32
    %13 = vector.broadcast %12 : i1 to vector<8x256xi1>
    %14 = vector.broadcast %13 : vector<8x256xi1> to vector<8x256xi1>
    %15 = arith.xori %11, %14 : vector<8x256xi1>
    %16 = arith.andi %15, %9 : vector<8x256xi1>
    %17 = vector.broadcast %5 : i32 to vector<8x256xi32>
    %18 = arith.addi %7, %17 : vector<8x256xi32>
    %19 = arith.select %16, %18, %7 : vector<8x256xi1>, vector<8x256xi32>
    %c0_i32_5 = arith.constant 0 : i32
    %20 = vector.broadcast %c0_i32_5 : i32 to vector<8x256xi32>
    %21 = arith.cmpi sgt, %19, %20 : vector<8x256xi32>
    %c15_i32 = arith.constant 15 : i32
    %22 = vector.broadcast %c15_i32 : i32 to vector<8x256xi32>
    %23 = arith.cmpi slt, %19, %22 : vector<8x256xi32>
    %cst_6 = arith.constant 1.000000e+00 : f32
    %24 = vector.broadcast %cst_6 : f32 to vector<1x256xf32>
    %c0_7 = arith.constant 0 : index
    %c0_8 = arith.constant 0 : index
    %25 = vector.load %arg2[%c0_7, %c0_8] : memref<24x73xf32, #tpu.memory_space<vmem>>, vector<24x73xf32>
    %c0_9 = arith.constant 0 : index
    %c0_10 = arith.constant 0 : index
    %c0_11 = arith.constant 0 : index
    %26 = vector.load %arg1[%c0_9, %c0_10, %c0_11] : memref<1x8x256xf32, #tpu.memory_space<vmem>>, vector<1x8x256xf32>
    %27 = vector.shape_cast %26 : vector<1x8x256xf32> to vector<8x256xf32>
    %c0_12 = arith.constant 0 : index
    %c128 = arith.constant 128 : index
    %28 = vector.load %arg5[%c0_12, %c128] : memref<8x512xf32, #tpu.memory_space<vmem>>, vector<8x256xf32>
    tpu.vector_store %arg5[%c0_12, %c128], %27 {strides = array<i32>} : memref<8x512xf32, #tpu.memory_space<vmem>>, vector<8x256xf32>,
    %c0_13 = arith.constant 0 : index
    %c0_14 = arith.constant 0 : index
    %29 = vector.load %arg5[%c0_13, %c0_14] : memref<8x512xf32, #tpu.memory_space<vmem>>, vector<8x512xf32>
    %30 = vector.extract_strided_slice %29 {offsets = [0, 111], sizes = [8, 256], strides = [1, 1]} : vector<8x512xf32> to vector<8x256xf32>
    %cst_15 = arith.constant 0.000000e+00 : f32
    %31 = vector.broadcast %cst_15 : f32 to vector<8x256xf32>
    %32 = arith.select %21, %30, %31 : vector<8x256xi1>, vector<8x256xf32>
    %33 = vector.extract_strided_slice %29 {offsets = [0, 112], sizes = [8, 256], strides = [1, 1]} : vector<8x512xf32> to vector<8x256xf32>
    %34 = vector.extract_strided_slice %29 {offsets = [0, 113], sizes = [8, 256], strides = [1, 1]} : vector<8x512xf32> to vector<8x256xf32>
    %cst_16 = arith.constant 0.000000e+00 : f32
    %35 = vector.broadcast %cst_16 : f32 to vector<8x256xf32>
    %36 = arith.select %23, %34, %35 : vector<8x256xi1>, vector<8x256xf32>
    %37 = vector.extract_strided_slice %29 {offsets = [0, 127], sizes = [8, 256], strides = [1, 1]} : vector<8x512xf32> to vector<8x256xf32>
    %cst_17 = arith.constant 0.000000e+00 : f32
    %38 = vector.broadcast %cst_17 : f32 to vector<8x256xf32>
    %39 = arith.select %21, %37, %38 : vector<8x256xi1>, vector<8x256xf32>
    %40 = vector.extract_strided_slice %29 {offsets = [0, 128], sizes = [8, 256], strides = [1, 1]} : vector<8x512xf32> to vector<8x256xf32>
    %41 = vector.extract_strided_slice %29 {offsets = [0, 129], sizes = [8, 256], strides = [1, 1]} : vector<8x512xf32> to vector<8x256xf32>
    %cst_18 = arith.constant 0.000000e+00 : f32
    %42 = vector.broadcast %cst_18 : f32 to vector<8x256xf32>
    %43 = arith.select %23, %41, %42 : vector<8x256xi1>, vector<8x256xf32>
    %44 = vector.extract_strided_slice %29 {offsets = [0, 143], sizes = [8, 256], strides = [1, 1]} : vector<8x512xf32> to vector<8x256xf32>
    %cst_19 = arith.constant 0.000000e+00 : f32
    %45 = vector.broadcast %cst_19 : f32 to vector<8x256xf32>
    %46 = arith.select %21, %44, %45 : vector<8x256xi1>, vector<8x256xf32>
    %47 = vector.extract_strided_slice %29 {offsets = [0, 144], sizes = [8, 256], strides = [1, 1]} : vector<8x512xf32> to vector<8x256xf32>
    %48 = vector.extract_strided_slice %29 {offsets = [0, 145], sizes = [8, 256], strides = [1, 1]} : vector<8x512xf32> to vector<8x256xf32>
    %cst_20 = arith.constant 0.000000e+00 : f32
    %49 = vector.broadcast %cst_20 : f32 to vector<8x256xf32>
    %50 = arith.select %23, %48, %49 : vector<8x256xi1>, vector<8x256xf32>
    %51 = tpu.concatenate %32, %33, %36, %39, %40, %43, %46, %47, %50, %24 in 0 : vector<8x256xf32>, vector<8x256xf32>, vector<8x256xf32>, vector<8x256xf32>, vector<8x256xf32>, vector<8x256xf32>, vector<8x256xf32>, vector<8x256xf32>, vector<8x256xf32>, vector<1x256xf32> -> vector<73x256xf32>
    %cst_21 = arith.constant dense<0.000000e+00> : vector<24x256xf32>
    %52 = tpu.matmul %25, %51, %cst_21 {dimension_numbers = #tpu.dot_dimension_numbers<[1], [0], [0], [1], [0, 0, 1, 1], [], []>} : vector<24x73xf32>, vector<73x256xf32>, vector<24x256xf32> -> vector<24x256xf32>
    %53 = vector.extract_strided_slice %52 {offsets = [0, 0], sizes = [8, 256], strides = [1, 1]} : vector<24x256xf32> to vector<8x256xf32>
    %c0_22 = arith.constant 0 : index
    %c0_23 = arith.constant 0 : index
    %c0_24 = arith.constant 0 : index
    %54 = vector.load %arg3[%c0_22, %c0_23, %c0_24] : memref<1x8x256xf32, #tpu.memory_space<vmem>>, vector<1x8x256xf32>
    %55 = vector.shape_cast %54 : vector<1x8x256xf32> to vector<8x256xf32>
    %56 = vector.shape_cast %53 : vector<8x256xf32> to vector<1x8x256xf32>
    tpu.vector_store %arg3[%c0_22, %c0_23, %c0_24], %56 {strides = array<i32>} : memref<1x8x256xf32, #tpu.memory_space<vmem>>, vector<1x8x256xf32>,
    %57 = vector.extract_strided_slice %52 {offsets = [8, 0], sizes = [16, 256], strides = [1, 1]} : vector<24x256xf32> to vector<16x256xf32>
    %c0_25 = arith.constant 0 : index
    %c0_26 = arith.constant 0 : index
    %c0_27 = arith.constant 0 : index
    %58 = vector.load %arg4[%c0_25, %c0_26, %c0_27] : memref<1x16x256xf32, #tpu.memory_space<vmem>>, vector<1x16x256xf32>
    %59 = vector.shape_cast %58 : vector<1x16x256xf32> to vector<16x256xf32>
    %60 = vector.shape_cast %57 : vector<16x256xf32> to vector<1x16x256xf32>
    tpu.vector_store %arg4[%c0_25, %c0_26, %c0_27], %60 {strides = array<i32>} : memref<1x16x256xf32, #tpu.memory_space<vmem>>, vector<1x16x256xf32>,
    return
  }
  func.func @transform_0(%arg0: i32) -> (i32, i32, i32) {
    %c0_i32 = arith.constant 0 : i32
    %c0_i32_0 = arith.constant 0 : i32
    %c0_i32_1 = arith.constant 0 : i32
    return %arg0, %c0_i32, %c0_i32_0 : i32, i32, i32
  }
  func.func @transform_1(%arg0: i32) -> (i32, i32) {
    %c0_i32 = arith.constant 0 : i32
    %c0_i32_0 = arith.constant 0 : i32
    %c0_i32_1 = arith.constant 0 : i32
    return %c0_i32, %c0_i32_0 : i32, i32
  }
  func.func @transform_2(%arg0: i32) -> (i32, i32, i32) {
    %c0_i32 = arith.constant 0 : i32
    %c0_i32_0 = arith.constant 0 : i32
    %c0_i32_1 = arith.constant 0 : i32
    return %arg0, %c0_i32, %c0_i32_0 : i32, i32, i32
  }
  func.func @transform_3(%arg0: i32) -> (i32, i32, i32) {
    %c0_i32 = arith.constant 0 : i32
    %c0_i32_0 = arith.constant 0 : i32
    %c0_i32_1 = arith.constant 0 : i32
    return %arg0, %c0_i32, %c0_i32_0 : i32, i32, i32
  }
}

</mosaic_0001>

<llo_original>
// kernel: multi_branch_forward.1
$region0: #{multi_branch_forward.1}
  #allocation0 [shape = 'u32[]', space=smem, size = 0x4, offset = 0x4, fixed_abs, tag = 'smem constant byte address 0x4 - core index']
  #allocation1 [shape = 'u32[144,128]{1,0:T(1,128)}', space=vmem, size = 0x12000, scoped, tag = 'internal scratch']
  #allocation2 [shape = 'f32[8,512]{1,0:T(8,128)}', space=vmem, size = 0x4000, scoped, tag = 'scratch operand']
  %s0 = inlined_call_operand.vmem [shape: f32[2,8,256], index: 0, kind: input, shape index: {}]
  %s1 = inlined_call_operand.vmem [shape: f32[24,73], index: 1, kind: input, shape index: {}]
  %s2 = inlined_call_operand.vmem [shape: f32[2,8,256], index: 2, kind: output, shape index: {0}]
  %s3 = inlined_call_operand.vmem [shape: f32[2,16,256], index: 3, kind: output, shape index: {1}]
  %4 = xla_tuple %s2, %s3
  %s5 = sld [smem:[#allocation0]]
  $region49: #{multi_branch_forward.1} parent=0
    _
  %s7 = ssub.s32 1, %s5
  %s8 = scalar_select 0, %s7, %s5
  loop: start=0, step=1, limit=4
  $region2: #{multi_branch_forward.1} parent=0 // loop_pre_header
    _
  $region3: #{multi_branch_forward.1} parent=0 // loop_header
    %s10 = sphi 0, %s14
    %p11 = scmp.ge.s32.totalorder %s10, 4
    %s20 = sphi 0, %s22
    %s23 = sphi 0, %s20
    %s24 = sphi 0, %s23
    %s40 = sphi 0, %s24
    %s44 = sphi 0, %s44
    %s46 = sphi 0, %s44
    %s47 = sphi 0, %s46
    %s61 = sphi 0, %s47
    %s67 = sphi 0, %s69
    %s70 = sphi 0, %s67
    %s71 = sphi 0, %s70
    %s87 = sphi 0, %s71
    %s93 = sphi 0, %s95
    %s96 = sphi 0, %s93
    %s97 = sphi 0, %s96
    %s113 = sphi 0, %s97
  $region4: #{multi_branch_forward.1} parent=0 // loop_header_branch
    %13 = sbr.rel (%p11) target = $region8
  $region5: #{multi_branch_forward.1} parent=0 // loop_body
    %s15 = ssub.s32 %s10, 1
    %s16 = ssub.s32 %s10, 2
    %s17 = sadd.s32 %s10, 1
    %s18 = ssub.s32 %s10, %s17
    %p19 = scmp.eq.s32.totalorder %s18, 0
    %s21 = sadd.s32 %s20, 1
    %s22 = scalar_select %p19, %s20, %s21
    %p25 = pneg %p19
    %p26 = scmp.eq.s32.totalorder %s10, 1
    %p27 = por %p25, %p26
    %p28 = scmp.ne.s32.totalorder %s20, %s23
    %p29 = scmp.eq.s32.totalorder %s10, 0
    %p30 = por %p28, %p29
    %p31 = scmp.ne.s32.totalorder %s20, %s23
    %p32 = scmp.eq.s32.totalorder %s15, 1
    %p33 = por %p31, %p32
    %p34 = scmp.ne.s32.totalorder %s23, %s24
    %p35 = scmp.eq.s32.totalorder %s15, 0
    %p36 = por %p34, %p35
    %p37 = scmp.ne.s32.totalorder %s23, %s24
    %p38 = scmp.eq.s32.totalorder %s16, 1
    %p39 = por %p37, %p38
    %p41 = scmp.ne.s32.totalorder %s24, %s40
    %p42 = scmp.eq.s32.totalorder %s16, 0
    %p43 = por %p41, %p42
    %s45 = sadd.s32 %s44, 1
    %p48 = scmp.eq.s32.totalorder %s10, 1
    %p49 = scmp.ne.s32.totalorder %s44, %s46
    %p50 = scmp.eq.s32.totalorder %s10, 0
    %p51 = por %p49, %p50
    %p52 = scmp.ne.s32.totalorder %s44, %s46
    %p53 = scmp.eq.s32.totalorder %s15, 1
    %p54 = por %p52, %p53
    %p55 = scmp.ne.s32.totalorder %s46, %s47
    %p56 = scmp.eq.s32.totalorder %s15, 0
    %p57 = por %p55, %p56
    %p58 = scmp.ne.s32.totalorder %s46, %s47
    %p59 = scmp.eq.s32.totalorder %s16, 1
    %p60 = por %p58, %p59
    %p62 = scmp.ne.s32.totalorder %s47, %s61
    %p63 = scmp.eq.s32.totalorder %s16, 0
    %p64 = por %p62, %p63
    %s65 = ssub.s32 %s10, %s17
    %p66 = scmp.eq.s32.totalorder %s65, 0
    %s68 = sadd.s32 %s67, 1
    %s69 = scalar_select %p66, %s67, %s68
    %p72 = pneg %p66
    %p73 = scmp.eq.s32.totalorder %s10, 1
    %p74 = por %p72, %p73
    %p75 = scmp.ne.s32.totalorder %s67, %s70
    %p76 = scmp.eq.s32.totalorder %s10, 0
    %p77 = por %p75, %p76
    %p78 = scmp.ne.s32.totalorder %s67, %s70
    %p79 = scmp.eq.s32.totalorder %s15, 1
    %p80 = por %p78, %p79
    %p81 = scmp.ne.s32.totalorder %s70, %s71
    %p82 = scmp.eq.s32.totalorder %s15, 0
    %p83 = por %p81, %p82
    %p84 = scmp.ne.s32.totalorder %s70, %s71
    %p85 = scmp.eq.s32.totalorder %s16, 1
    %p86 = por %p84, %p85
    %p88 = scmp.ne.s32.totalorder %s71, %s87
    %p89 = scmp.eq.s32.totalorder %s16, 0
    %p90 = por %p88, %p89
    %s91 = ssub.s32 %s10, %s17
    %p92 = scmp.eq.s32.totalorder %s91, 0
    %s94 = sadd.s32 %s93, 1
    %s95 = scalar_select %p92, %s93, %s94
    %p98 = pneg %p92
    %p99 = scmp.eq.s32.totalorder %s10, 1
    %p100 = por %p98, %p99
    %p101 = scmp.ne.s32.totalorder %s93, %s96
    %p102 = scmp.eq.s32.totalorder %s10, 0
    %p103 = por %p101, %p102
    %p104 = scmp.ne.s32.totalorder %s93, %s96
    %p105 = scmp.eq.s32.totalorder %s15, 1
    %p106 = por %p104, %p105
    %p107 = scmp.ne.s32.totalorder %s96, %s97
    %p108 = scmp.eq.s32.totalorder %s15, 0
    %p109 = por %p107, %p108
    %p110 = scmp.ne.s32.totalorder %s96, %s97
    %p111 = scmp.eq.s32.totalorder %s16, 1
    %p112 = por %p110, %p111
    %p114 = scmp.ne.s32.totalorder %s97, %s113
    %p115 = scmp.eq.s32.totalorder %s16, 0
    %p116 = por %p114, %p115
    %p117 = scmp.le.s32.totalorder 1, %s10
    %p118 = scmp.lt.s32.totalorder %s10, 3
    %p119 = pnand %p117, %p118
    %p120 = pneg %p119
    // Predicated region
    $region9: #{multi_branch_forward.1} parent=5 // pred_check
      _
    $region10: #{multi_branch_forward.1} parent=5 // pred_check_branch
      %122 = sbr.rel (%p119) target = $region12
    $region11: #{multi_branch_forward.1} parent=5 // pred_region
      %s123 = ssub.s32 %s10, 1
      // Predicated region
      $region13: #{multi_branch_forward.1} parent=11 // pred_check
        %p124 = pneg %p57
      $region14: #{multi_branch_forward.1} parent=11 // pred_check_branch
        %126 = sbr.rel (%p124) target = $region16
      $region15: #{multi_branch_forward.1} parent=11 // pred_region
        _
      $region16: #{multi_branch_forward.1} parent=11 // pred_fallthru
        _
    $region12: #{multi_branch_forward.1} parent=5 // pred_fallthru
      _
    %p127 = scmp.lt.s32.totalorder %s10, 2
    // Predicated region
    $region17: #{multi_branch_forward.1} parent=5 // pred_check
      %p128 = pneg %p127
    $region18: #{multi_branch_forward.1} parent=5 // pred_check_branch
      %130 = sbr.rel (%p128) target = $region20
    $region19: #{multi_branch_forward.1} parent=5 // pred_region
      // Predicated region
      $region21: #{multi_branch_forward.1} parent=19 // pred_check
        %p131 = pneg %p30
      $region22: #{multi_branch_forward.1} parent=19 // pred_check_branch
        %133 = sbr.rel (%p131) target = $region24
      $region23: #{multi_branch_forward.1} parent=19 // pred_region
        %p134 = scmp.lt.s32.totalorder %s10, 1
        %s135 = scalar_select %p134, %s10, 1
        %s136 = smul.addr %s135, 2
        %s137 = smul.addr %s136, 8
        %s138 = scalar_lea.vmem %s0, %s137
      $region24: #{multi_branch_forward.1} parent=19 // pred_fallthru
        _
    $region20: #{multi_branch_forward.1} parent=5 // pred_fallthru
      _
    %p139 = scmp.le.s32.totalorder 1, %s10
    %p140 = scmp.lt.s32.totalorder %s10, 3
    %p141 = pnand %p139, %p140
    %p142 = pneg %p141
    // Predicated region
    $region25: #{multi_branch_forward.1} parent=5 // pred_check
      _
    $region26: #{multi_branch_forward.1} parent=5 // pred_check_branch
      %144 = sbr.rel (%p141) target = $region28
    $region27: #{multi_branch_forward.1} parent=5 // pred_region
      %s145 = ssub.s32 %s10, 1
      %p146 = scmp.lt.s32.totalorder %s15, 1
      %s147 = scalar_select %p146, %s15, 1
      %s148 = smul.addr %s147, 2
      %s149 = smul.addr %s148, 8
      %s150 = scalar_lea.vmem %s0, %s149
      %p151 = pneg %p36
      %p152 = pneg %p33
      %p153 = pneg %p57
      %p154 = pneg %p54
      %p155 = pneg %p83
      %p156 = pneg %p80
      %p157 = scmp.lt.s32.totalorder %s15, 1
      %s158 = scalar_select %p157, %s15, 1
      %s159 = smul.addr %s158, 2
      %s160 = smul.addr %s159, 8
      %s161 = scalar_lea.vmem %s2, %s160
      %p162 = pneg %p109
      %p163 = pneg %p106
      %p164 = scmp.lt.s32.totalorder %s15, 1
      %s165 = scalar_select %p164, %s15, 1
      %s166 = smul.addr %s165, 4
      %s167 = smul.addr %s166, 8
      %s168 = scalar_lea.vmem %s3, %s167
      %p169 = scmp.lt.s32.totalorder %s15, 1
      %s170 = scalar_select %p169, %s15, 1
      %s171 = smul.addr %s170, 2
      %s172 = smul.addr %s171, 8
      %s173 = scalar_lea.vmem %s0, %s172
      %p174 = scmp.lt.s32.totalorder %s15, 1
      %s175 = scalar_select %p174, %s15, 1
      %s176 = smul.addr %s175, 2
      %s177 = smul.addr %s176, 8
      %s178 = scalar_lea.vmem %s2, %s177
      %p179 = scmp.lt.s32.totalorder %s15, 1
      %s180 = scalar_select %p179, %s15, 1
      %s181 = smul.addr %s180, 4
      %s182 = smul.addr %s181, 8
      %s183 = scalar_lea.vmem %s3, %s182
      %184 = vst [vmem:[#allocation2] sm:$0xff] 0.0
      %185 = vst [vmem:[#allocation2 + $0x18] sm:$0xff] 0.0
      %v186 = vlaneseq
      %v187 = vand.u32 %v186, 127
      %v188 = vadd.s32 %v187, 128
      %vm189 = vcmp.lt.s32.totalorder %v187, 0
      %v190 = vsub.s32 0, %v187
      %v191 = vsel %vm189, %v190, %v187
      %v192 = vshrl.u32 %v191, 4
      %v193 = vand.u32 %v191, 15
      %v194 = vsub.s32 0, %v193
      %v195 = vsel %vm189, %v194, %v193
      %vm196 = vcmp.lt.s32.totalorder %v188, 0
      %v197 = vsub.s32 0, %v188
      %v198 = vsel %vm196, %v197, %v188
      %v199 = vshrl.u32 %v198, 4
      %v200 = vand.u32 %v198, 15
      %v201 = vsub.s32 0, %v200
      %v202 = vsel %vm196, %v201, %v200
      %vm203 = vcmp.ne.s32.totalorder %v195, 0
      %vm204 = vcmp.ne.s32.totalorder %v202, 0
      %vm205 = vcmp.lt.s32.totalorder %v195, 0
      %vm206 = vcmp.lt.s32.totalorder %v202, 0
      %vm207 = vmand %vm205, %vm203
      %vm208 = vmand %vm206, %vm204
      %v209 = vadd.s32 %v195, 16
      %v210 = vadd.s32 %v202, 16
      %v211 = vsel %vm207, %v209, %v195
      %v212 = vsel %vm208, %v210, %v202
      %vm213 = vcmp.gt.s32.totalorder %v211, 0
      %vm214 = vcmp.gt.s32.totalorder %v212, 0
      %vm215 = vcmp.lt.s32.totalorder %v211, 15
      %vm216 = vcmp.lt.s32.totalorder %v212, 15
      %v217 = vld [vmem:[%s1] sm:$0xff]
      %v218 = vld [vmem:[%s1 + $0x8] sm:$0xff]
      %v219 = vld [vmem:[%s1 + $0x10] sm:$0xff]
      %v220 = vld [vmem:[%s173] sm:$0xff]
      %v221 = vld [vmem:[%s173 + $0x8] sm:$0xff]
      %222 = vst [vmem:[#allocation2 + $0x8] sm:$0xff] %v220
      %223 = vst [vmem:[#allocation2 + $0x10] sm:$0xff] %v221
      %v224 = vld [vmem:[#allocation2] sm:$0xff]
      %v225 = vld [vmem:[#allocation2 + $0x8] sm:$0xff]
      %v226 = vld [vmem:[#allocation2 + $0x10] sm:$0xff]
      %v227 = vld [vmem:[#allocation2 + $0x18] sm:$0xff]
      %231 = vrot.lane.b32.xlu0 %v224, 17
      %v232 = vpop.permute.xlu0 %231
      %233 = vrot.lane.b32.xlu0 %v225, 17
      %v234 = vpop.permute.xlu0 %233
      %235 = vrot.lane.b32.xlu0 %v226, 17
      %v236 = vpop.permute.xlu0 %235
      %vm237 = vcmask 138240
      %v238 = vsel %vm237, %v232, %v234
      %v239 = vsel %vm237, %v234, %v236
      %v242 = vsel %vm213, %v238, 0.0
      %v243 = vsel %vm214, %v239, 0.0
      %244 = vrot.lane.b32.xlu0 %v224, 15
      %v245 = vpop.permute.xlu0 %244
      %246 = vrot.lane.b32.xlu0 %v225, 15
      %v247 = vpop.permute.xlu0 %246
      %248 = vrot.lane.b32.xlu0 %v226, 15
      %v249 = vpop.permute.xlu0 %248
      %vm250 = vcmask 121856
      %v251 = vsel %vm250, %v245, %v247
      %v252 = vsel %vm250, %v247, %v249
      %v255 = vsel %vm215, %v251, 0.0
      %v256 = vsel %vm216, %v252, 0.0
      %257 = vrot.lane.b32.xlu0 %v224, 1
      %v258 = vpop.permute.xlu0 %257
      %259 = vrot.lane.b32.xlu0 %v225, 1
      %v260 = vpop.permute.xlu0 %259
      %261 = vrot.lane.b32.xlu0 %v226, 1
      %v262 = vpop.permute.xlu0 %261
      %vm263 = vcmask 7168
      %v264 = vsel %vm263, %v258, %v260
      %v265 = vsel %vm263, %v260, %v262
      %v268 = vsel %vm213, %v264, 0.0
      %v269 = vsel %vm214, %v265, 0.0
      %271 = vrot.lane.b32.xlu0 %v225, 127
      %v272 = vpop.permute.xlu0 %271
      %273 = vrot.lane.b32.xlu0 %v226, 127
      %v274 = vpop.permute.xlu0 %273
      %275 = vrot.lane.b32.xlu0 %v227, 127
      %v276 = vpop.permute.xlu0 %275
      %vm277 = vcmask 1039360
      %v278 = vsel %vm277, %v272, %v274
      %v279 = vsel %vm277, %v274, %v276
      %v282 = vsel %vm215, %v278, 0.0
      %v283 = vsel %vm216, %v279, 0.0
      %284 = vrot.lane.b32.xlu0 %v225, 113
      %v285 = vpop.permute.xlu0 %284
      %286 = vrot.lane.b32.xlu0 %v226, 113
      %v287 = vpop.permute.xlu0 %286
      %288 = vrot.lane.b32.xlu0 %v227, 113
      %v289 = vpop.permute.xlu0 %288
      %vm290 = vcmask 924672
      %v291 = vsel %vm290, %v285, %v287
      %v292 = vsel %vm290, %v287, %v289
      %v295 = vsel %vm213, %v291, 0.0
      %v296 = vsel %vm214, %v292, 0.0
      %297 = vrot.lane.b32.xlu0 %v225, 111
      %v298 = vpop.permute.xlu0 %297
      %299 = vrot.lane.b32.xlu0 %v226, 111
      %v300 = vpop.permute.xlu0 %299
      %301 = vrot.lane.b32.xlu0 %v227, 111
      %v302 = vpop.permute.xlu0 %301
      %vm303 = vcmask 908288
      %v304 = vsel %vm303, %v298, %v300
      %v305 = vsel %vm303, %v300, %v302
      %v308 = vsel %vm215, %v304, 0.0
      %v309 = vsel %vm216, %v305, 0.0
      %310 = vrot.lane.b32.xlu0 %v224, 16
      %v311 = vpop.permute.xlu0 %310
      %312 = vrot.lane.b32.xlu0 %v225, 16
      %v313 = vpop.permute.xlu0 %312
      %314 = vrot.lane.b32.xlu0 %v226, 16
      %v315 = vpop.permute.xlu0 %314
      %vm316 = vcmask 130048
      %v317 = vsel %vm316, %v311, %v313
      %v318 = vsel %vm316, %v313, %v315
      %321 = vrot.lane.b32.xlu0 %v225, 112
      %v322 = vpop.permute.xlu0 %321
      %323 = vrot.lane.b32.xlu0 %v226, 112
      %v324 = vpop.permute.xlu0 %323
      %325 = vrot.lane.b32.xlu0 %v227, 112
      %v326 = vpop.permute.xlu0 %325
      %vm327 = vcmask 916480
      %v328 = vsel %vm327, %v322, %v324
      %v329 = vsel %vm327, %v324, %v326
      %vm332 = vcmask 596992
      %v334 = vsel %vm332, %v217, 0
      %v337 = vsel %vm332, %v218, 0
      %v340 = vsel %vm332, %v219, 0
      %vm342 = vcmask 1040384
      %v344 = vsel %vm342, 1.0, 0
      %346 = vmatprep.subr.mxu0 0.0
      %347 = vmatpush1.msra.mxu0 0.0
      %348 = vmatprep.subr.mxu0 0.0
      %349 = vmatpush1.msra.mxu0 0.0
      %350 = vmatprep.subr.mxu0 0.0
      %351 = vmatpush1.msra.mxu0 0.0
      %352 = vmatprep.subr.mxu0 0.0
      %353 = vmatpush1.msra.mxu0 0.0
      %354 = vmatprep.subr.mxu0 0.0
      %355 = vmatpush1.msra.mxu0 0.0
      %356 = vmatprep.subr.mxu0 0.0
      %357 = vmatpush1.msra.mxu0 0.0
      %358 = vmatprep.subr.mxu0 %v344
      %359 = vmatpush1.msra.mxu0 %v344
      %360 = vmatprep.subr.mxu0 %v309
      %361 = vmatpush1.msra.mxu0 %v308
      %362 = vmatprep.subr.mxu0 %v329
      %363 = vmatpush1.msra.mxu0 %v328
      %364 = vmatprep.subr.mxu0 %v296
      %365 = vmatpush1.msra.mxu0 %v295
      %366 = vmatprep.subr.mxu0 %v283
      %367 = vmatpush1.msra.mxu0 %v282
      %368 = vmatprep.subr.mxu0 %v226
      %369 = vmatpush1.msra.mxu0 %v225
      %370 = vmatprep.subr.mxu0 %v269
      %371 = vmatpush1.msra.mxu0 %v268
      %372 = vmatprep.subr.mxu0 %v256
      %373 = vmatpush1.msra.mxu0 %v255
      %374 = vmatprep.subr.mxu0 %v318
      %375 = vmatpush1.msra.mxu0 %v317
      %376 = vmatprep.subr.mxu0 %v243
      %377 = vmatpush1.msra.mxu0 %v242
      %378 = vmatprep.subr.mxu0 0.0
      %379 = vmatpush2.msra.mxu0 0.0
      %380 = vmatprep.subr.mxu0 0.0
      %381 = vmatpush2.msra.mxu0 0.0
      %382 = vmatprep.subr.mxu0 0.0
      %383 = vmatpush2.msra.mxu0 0.0
      %384 = vmatprep.subr.mxu0 0.0
      %385 = vmatpush2.msra.mxu0 0.0
      %386 = vmatprep.subr.mxu0 0.0
      %387 = vmatpush2.msra.mxu0 0.0
      %388 = vmatprep.subr.mxu0 0.0
      %389 = vmatpush2.msra.mxu0 0.0
      %390 = vmatprep.subr.mxu0 0.0
      %391 = vmatpush2.msra.mxu0 0.0
      %392 = vmatprep.subr.mxu0 0.0
      %393 = vmatpush2.msra.mxu0 0.0
      %394 = vmatprep.subr.mxu0 0.0
      %395 = vmatpush2.msra.mxu0 0.0
      %396 = vmatprep.subr.mxu0 0.0
      %397 = vmatpush2.msra.mxu0 0.0
      %398 = vmatprep.subr.mxu0 0.0
      %399 = vmatpush2.msra.mxu0 0.0
      %400 = vmatprep.subr.mxu0 0.0
      %401 = vmatpush2.msra.mxu0 0.0
      %402 = vmatprep.subr.mxu0 0.0
      %403 = vmatpush2.msra.mxu0 0.0
      %404 = vmatprep.subr.mxu0 0.0
      %405 = vmatpush2.msra.mxu0 0.0
      %406 = vmatprep.subr.mxu0 0.0
      %407 = vmatpush2.msra.mxu0 0.0
      %408 = vmatprep.subr.mxu0 0.0
      %409 = vmatpush2.msra.mxu0 0.0
      %410 = vmatprep.mubr.f32.mxu0 0.0
      %411 = vmatmul.mubr.f32.gmra.mxu0 %v334
      %v412 = vpop.f32.mrf.mxu0
      %v413 = vadd.f32 0.0, %v412
      %v414 = vpop.f32.mrf.mxu0
      %v415 = vadd.f32 0.0, %v414
      %416 = vmatprep.mubr.f32.mxu0 0.0
      %417 = vmatmul.mubr.f32.gmra.mxu0 %v337
      %v418 = vpop.f32.mrf.mxu0
      %v419 = vadd.f32 0.0, %v418
      %v420 = vpop.f32.mrf.mxu0
      %v421 = vadd.f32 0.0, %v420
      %422 = vmatprep.mubr.f32.mxu0 0.0
      %423 = vmatmul.mubr.f32.gmra.mxu0 %v340
      %v424 = vpop.f32.mrf.mxu0
      %v425 = vadd.f32 0.0, %v424
      %v426 = vpop.f32.mrf.mxu0
      %v427 = vadd.f32 0.0, %v426
      %428 = vdwg.mxu0
      %429 = vst [vmem:[%s178] sm:$0xff] %v413
      %430 = vst [vmem:[%s178 + $0x8] sm:$0xff] %v415
      %431 = vst [vmem:[%s183] sm:$0xff] %v419
      %432 = vst [vmem:[%s183 + $0x8] sm:$0xff] %v421
      %433 = vst [vmem:[%s183 + $0x10] sm:$0xff] %v425
      %434 = vst [vmem:[%s183 + $0x18] sm:$0xff] %v427
      %p435 = scmp.lt.s32.totalorder %s15, 1
      %s436 = scalar_select %p435, %s15, 1
      %s437 = smul.addr %s436, 2
      %s438 = smul.addr %s437, 8
      %s439 = scalar_lea.vmem %s2, %s438
      %p440 = scmp.lt.s32.totalorder %s15, 1
      %s441 = scalar_select %p440, %s15, 1
      %s442 = smul.addr %s441, 4
      %s443 = smul.addr %s442, 8
      %s444 = scalar_lea.vmem %s3, %s443
      // Predicated region
      $region29: #{multi_branch_forward.1} parent=27 // pred_check
        %p445 = pneg %p80
      $region30: #{multi_branch_forward.1} parent=27 // pred_check_branch
        %447 = sbr.rel (%p445) target = $region32
      $region31: #{multi_branch_forward.1} parent=27 // pred_region
        _
      $region32: #{multi_branch_forward.1} parent=27 // pred_fallthru
        _
      // Predicated region
      $region33: #{multi_branch_forward.1} parent=27 // pred_check
        %p448 = pneg %p106
      $region34: #{multi_branch_forward.1} parent=27 // pred_check_branch
        %450 = sbr.rel (%p448) target = $region36
      $region35: #{multi_branch_forward.1} parent=27 // pred_region
        _
      $region36: #{multi_branch_forward.1} parent=27 // pred_fallthru
        _
    $region28: #{multi_branch_forward.1} parent=5 // pred_fallthru
      _
    %p451 = scmp.le.s32.totalorder 2, %s10
    // Predicated region
    $region37: #{multi_branch_forward.1} parent=5 // pred_check
      %p452 = pneg %p451
    $region38: #{multi_branch_forward.1} parent=5 // pred_check_branch
      %454 = sbr.rel (%p452) target = $region40
    $region39: #{multi_branch_forward.1} parent=5 // pred_region
      %s455 = ssub.s32 %s10, 2
      // Predicated region
      $region41: #{multi_branch_forward.1} parent=39 // pred_check
        %p456 = pneg %p86
      $region42: #{multi_branch_forward.1} parent=39 // pred_check_branch
        %458 = sbr.rel (%p456) target = $region44
      $region43: #{multi_branch_forward.1} parent=39 // pred_region
        %p459 = scmp.lt.s32.totalorder %s16, 1
        %s460 = scalar_select %p459, %s16, 1
        %s461 = smul.addr %s460, 2
        %s462 = smul.addr %s461, 8
        %s463 = scalar_lea.vmem %s2, %s462
      $region44: #{multi_branch_forward.1} parent=39 // pred_fallthru
        _
      // Predicated region
      $region45: #{multi_branch_forward.1} parent=39 // pred_check
        %p464 = pneg %p112
      $region46: #{multi_branch_forward.1} parent=39 // pred_check_branch
        %466 = sbr.rel (%p464) target = $region48
      $region47: #{multi_branch_forward.1} parent=39 // pred_region
        %p467 = scmp.lt.s32.totalorder %s16, 1
        %s468 = scalar_select %p467, %s16, 1
        %s469 = smul.addr %s468, 4
        %s470 = smul.addr %s469, 8
        %s471 = scalar_lea.vmem %s3, %s470
      $region48: #{multi_branch_forward.1} parent=39 // pred_fallthru
        _
    $region40: #{multi_branch_forward.1} parent=5 // pred_fallthru
      _
  $region6: #{multi_branch_forward.1} parent=0 // loop_footer
    %s14 = sadd.s32 1, %s10
  $region7: #{multi_branch_forward.1} parent=0 // loop_footer_branch
    %9 = sbr.rel target = $region3
  $region8: #{multi_branch_forward.1} parent=0 // loop_exit
    _

</llo_original>
